<compile_context>
chip_gen: v7x
topology: tpu7x:2x2x1
jax: 0.10.0
libtpu: 0.0.40
codegen_flags: <defaults>
</compile_context>

<pallas_src>
import jax
import jax.numpy as jnp
from jax.experimental import pallas as pl
from jax.experimental.pallas import tpu as pltpu


def _round_up(x, m):
    return ((x + m - 1) // m) * m


# -----------------------------------------------------------------------------
# Pallas kernel: fused build_inputs + 3-layer MLP for all agents of a row tile.
# -----------------------------------------------------------------------------
def _critic_kernel(x_ref, w1_ref, b1_ref, w2_ref, b2_ref, w3_ref, b3_ref,
                   o_ref):
    hidden = w2_ref.shape[0]
    n_agents = o_ref.shape[-1]
    rt = o_ref.shape[0]

    x = x_ref[...]                                       # (R, S+A*O) compute dt

    # fc1 for ALL agents in one MXU pass: W1 already carries the tiled state
    # part + block-diagonal per-agent obs part; agent one-hot folded into b1.
    h1 = jnp.dot(x, w1_ref[...], preferred_element_type=jnp.float32)  # (R, A*H)
    h1 = jnp.maximum(h1 + b1_ref[...], 0.0)                           # f32

    # Stack the per-agent hidden blocks (lane-aligned 128-wide slices) along
    # rows so fc2 is a single dot: one W2 push, one MXU fill/drain per tile.
    h1_cat = jnp.concatenate(
        [h1[:, a * hidden:(a + 1) * hidden] for a in range(n_agents)], axis=0)
    h2 = jnp.dot(h1_cat.astype(w2_ref.dtype), w2_ref[...],
                 preferred_element_type=jnp.float32)                  # (A*R, H)
    h2 = jnp.maximum(h2 + b2_ref[...], 0.0)

    # fc3 on the VPU/XLU: elementwise mul + cross-lane reduce (no skinny MXU
    # pass), fc3 weight passed as a (1, H) row.
    v = jnp.sum(h2 * w3_ref[...], axis=-1, keepdims=True) + b3_ref[...]  # (A*R,1)

    # Direct per-agent column stores (no in-register concatenate).
    for a in range(n_agents):                     # static unroll, A is small
        o_ref[:, a:a + 1] = v[a * rt:(a + 1) * rt, :]


# -----------------------------------------------------------------------------
# Parameter init (PyTorch nn.Linear-style; weights stored as (fan_in, fan_out)).
# -----------------------------------------------------------------------------
def init_mappo_critic_params(key, input_shape, hidden=128):
    def linear(k, fan_in, fan_out):
        k_w, k_b = jax.random.split(k)
        bound = 1.0 / jnp.sqrt(fan_in)
        w = jax.random.uniform(k_w, (fan_in, fan_out), jnp.float32,
                               -bound, bound)
        b = jax.random.uniform(k_b, (fan_out,), jnp.float32, -bound, bound)
        return w, b

    k1, k2, k3 = jax.random.split(key, 3)
    w1, b1 = linear(k1, input_shape, hidden)
    w2, b2 = linear(k2, hidden, hidden)
    w3, b3 = linear(k3, hidden, 1)
    return (w1, b1, w2, b2, w3, b3)


def build_inputs_reference(state, obs, n_agents):
    """Pure-JAX replica of MAPPOCritic._build_inputs (t=None) for testing."""
    bs, max_t, state_dim = state.shape
    state_rep = jnp.broadcast_to(state[:, :, None, :],
                                 (bs, max_t, n_agents, state_dim))
    agent_ids = jnp.broadcast_to(jnp.eye(n_agents, dtype=state.dtype),
                                 (bs, max_t, n_agents, n_agents))
    return jnp.concatenate([state_rep, obs, agent_ids], axis=-1)


# -----------------------------------------------------------------------------
# Wrapper: weight restructuring + kernel launch (fused _build_inputs).
# -----------------------------------------------------------------------------
def mappo_critic_forward(params, state, obs, n_agents, *,
                         row_tile=2048, compute_dtype=jnp.bfloat16,
                         vmem_limit_bytes=40 * 1024 * 1024):
    """state: (bs, T, S), obs: (bs, T, A, O).  Returns critic values.

    Shape (bs, T, A, 1), or (bs, A, 1) when T == 1 (matches torch .squeeze(1)).
    compute_dtype controls only the MXU matmul inputs; accumulation, biases,
    ReLU and fc3 stay f32.  Use compute_dtype=jnp.float32 for exactness.
    """
    w1, b1, w2, b2, w3, b3 = params
    bs, max_t, s_dim = state.shape
    _, _, a_dim, o_dim = obs.shape
    assert a_dim == n_agents
    hidden = w2.shape[0]

    # --- fc1 weight restructured so _build_inputs never materializes --------
    #   rows 0..S-1      : W1_state tiled across the A output blocks
    #   rows S..S+A*O-1  : block-diagonal per-agent W1_obs
    #   agent one-hot @ W1_agent + b1 folded into a (1, A*H) bias.
    w1_s = w1[:s_dim]                                    # (S, H)
    w1_o = w1[s_dim:s_dim + o_dim]                       # (O, H)
    w1_a = w1[s_dim + o_dim:]                            # (A, H)
    w1_o_bd = jnp.einsum('pa,oh->poah',
                         jnp.eye(n_agents, dtype=w1.dtype),
                         w1_o).reshape(n_agents * o_dim, n_agents * hidden)
    # TODO(synk): w1_o_bd footprint/FLOPs scale as A^2; for n_agents >= 8
    # switch back to a per-agent (rt,O)@(O,H) formulation.
    w1_fused = jnp.concatenate([jnp.tile(w1_s, (1, n_agents)), w1_o_bd], axis=0)
    b1_fused = (w1_a + b1[None, :]).reshape(1, n_agents * hidden)
    b1_fused = b1_fused.astype(jnp.float32)

    b2_2d = b2.reshape(1, hidden).astype(jnp.float32)
    w3_row = w3.reshape(1, hidden).astype(jnp.float32)
    b3_2d = b3.reshape(1, 1).astype(jnp.float32)

    # --- one fused input slab: [state | obs(all agents)] per (b, t) row -----
    rows = bs * max_t
    in_dim = s_dim + n_agents * o_dim
    x2d = jnp.concatenate([state.reshape(rows, s_dim),
                           obs.reshape(rows, n_agents * o_dim)], axis=-1)

    # --- row-tile selection (the dominant perf lever) ------------------------
    cbytes = jnp.dtype(compute_dtype).itemsize
    align = 16 if cbytes < 4 else 8            # bf16 sublane packing
    rows_min = _round_up(rows, align)
    rt = _round_up(max(int(row_tile), align), align)
    # Rough per-row VMEM: double-buffered in/out tiles + f32 intermediates.
    per_row = (2 * 128 * cbytes            # input block, 2 buffers, lane-padded
               + 2 * 128 * 4               # output block, 2 buffers, lane-padded
               + n_agents * hidden * (3 * 4 + cbytes))   # h1, h1_cat, h2 (+cast)
    budget = int(vmem_limit_bytes * 0.7)
    rt_cap = max(((budget // per_row) // align) * align, align)
    rt = min(rt, rt_cap)
    # Keep >= 2 grid steps when rows allow it so v7x's two TCs both get tiles.
    if rt >= rows_min and rows_min >= 2 * align:
        rt = min(rt, _round_up((rows_min + 1) // 2, align))
    rt = min(rt, rows_min)

    n_pad = _round_up(rows, rt)
    if n_pad != rows:
        x2d = jnp.pad(x2d, ((0, n_pad - rows), (0, 0)))

    x2d = x2d.astype(compute_dtype)
    w1_c = w1_fused.astype(compute_dtype)
    w2_c = w2.astype(compute_dtype)

    grid = (n_pad // rt,)
    out = pl.pallas_call(
        _critic_kernel,
        out_shape=jax.ShapeDtypeStruct((n_pad, n_agents), jnp.float32),
        grid_spec=pltpu.PrefetchScalarGridSpec(
            num_scalar_prefetch=0,
            grid=grid,
            in_specs=[
                pl.BlockSpec((rt, in_dim), lambda i: (i, 0)),           # x
                pl.BlockSpec((in_dim, n_agents * hidden),
                             lambda i: (0, 0)),                         # W1 fused
                pl.BlockSpec((1, n_agents * hidden), lambda i: (0, 0)),  # b1 fused
                pl.BlockSpec((hidden, hidden), lambda i: (0, 0)),       # W2
                pl.BlockSpec((1, hidden), lambda i: (0, 0)),            # b2
                pl.BlockSpec((1, hidden), lambda i: (0, 0)),            # w3 row
                pl.BlockSpec((1, 1), lambda i: (0, 0)),                 # b3
            ],
            out_specs=pl.BlockSpec((rt, n_agents), lambda i: (i, 0)),
        ),
        compiler_params=pltpu.CompilerParams(
            dimension_semantics=("parallel",),
            vmem_limit_bytes=int(vmem_limit_bytes)),
    )(x2d, w1_c, b1_fused, w2_c, b2_2d, w3_row, b3_2d)

    v = out[:rows].reshape(bs, max_t, n_agents, 1)
    if max_t == 1:                                    # torch .squeeze(1)
        v = v[:, 0]
    return v


# -----------------------------------------------------------------------------
if __name__ == "__main__":
    # Small synthetic config consistent with the module's scheme.
    bs = 2
    max_t = 5
    n_agents = 3
    state_dim = 12
    obs_dim = 9
    input_shape = state_dim + obs_dim + n_agents      # 24

    key = jax.random.PRNGKey(0)
    k_params, k_state, k_obs = jax.random.split(key, 3)

    params = init_mappo_critic_params(k_params, input_shape)
    state = jax.random.normal(k_state, (bs, max_t, state_dim), jnp.float32)
    obs = jax.random.normal(k_obs, (bs, max_t, n_agents, obs_dim), jnp.float32)

    # Pure-JAX reference (concat build_inputs + dense layers).
    w1, b1, w2, b2, w3, b3 = params
    x = build_inputs_reference(state, obs, n_agents)
    h = jnp.maximum(x @ w1 + b1, 0.0)
    h = jnp.maximum(h @ w2 + b2, 0.0)
    v_ref = h @ w3 + b3

    # Default path: bf16 MXU inputs (v6e/v7x-friendly), f32 accumulation.
    v_bf16 = mappo_critic_forward(params, state, obs, n_agents)
    v_bf16 = jax.block_until_ready(v_bf16)
    assert v_bf16.shape == (bs, max_t, n_agents, 1), v_bf16.shape
    assert jnp.allclose(v_bf16, v_ref, atol=5e-2, rtol=5e-2)

    # Exact f32 path (escape hatch); tight tolerance vs. the reference.
    v_f32 = mappo_critic_forward(params, state, obs, n_agents,
                                 compute_dtype=jnp.float32)
    v_f32 = jax.block_until_ready(v_f32)
    assert v_f32.shape == (bs, max_t, n_agents, 1), v_f32.shape
    assert jnp.allclose(v_f32, v_ref, atol=1e-4, rtol=1e-4)

    print("KERNEL_OK")
</pallas_src>

<mosaic_0001>
module attributes {stable_mosaic.version = 11 : i64} {
  func.func @_critic_kernel(%arg0: i32, %arg1: memref<16x39xbf16, #tpu.memory_space<vmem>>, %arg2: memref<39x384xbf16, #tpu.memory_space<vmem>>, %arg3: memref<1x384xf32, #tpu.memory_space<vmem>>, %arg4: memref<128x128xbf16, #tpu.memory_space<vmem>>, %arg5: memref<1x128xf32, #tpu.memory_space<vmem>>, %arg6: memref<1x128xf32, #tpu.memory_space<vmem>>, %arg7: memref<1x1xf32, #tpu.memory_space<vmem>>, %arg8: memref<16x3xf32, #tpu.memory_space<vmem>>) attributes {dimension_semantics = [#tpu.dimension_semantics<parallel>], iteration_bounds = array<i64: 1>, scalar_prefetch = 0 : i64, scratch_operands = 0 : i64, tpu.core_type = #tpu.core_type<tc>, window_params = [{transform_indices = @transform_0, window_bounds = array<i64: 16, 39>}, {pipeline_mode = #tpu.pipeline_mode<synchronous>, transform_indices = @transform_1, window_bounds = array<i64: 39, 384>}, {pipeline_mode = #tpu.pipeline_mode<synchronous>, transform_indices = @transform_2, window_bounds = array<i64: 1, 384>}, {pipeline_mode = #tpu.pipeline_mode<synchronous>, transform_indices = @transform_3, window_bounds = array<i64: 128, 128>}, {pipeline_mode = #tpu.pipeline_mode<synchronous>, transform_indices = @transform_4, window_bounds = array<i64: 1, 128>}, {pipeline_mode = #tpu.pipeline_mode<synchronous>, transform_indices = @transform_5, window_bounds = array<i64: 1, 128>}, {pipeline_mode = #tpu.pipeline_mode<synchronous>, transform_indices = @transform_6, window_bounds = array<i64: 1, 1>}, {transform_indices = @transform_7, window_bounds = array<i64: 16, 3>}]} {
    %c0 = arith.constant 0 : index
    %c0_0 = arith.constant 0 : index
    %0 = vector.load %arg1[%c0, %c0_0] : memref<16x39xbf16, #tpu.memory_space<vmem>>, vector<16x39xbf16>
    %c0_1 = arith.constant 0 : index
    %c0_2 = arith.constant 0 : index
    %1 = vector.load %arg2[%c0_1, %c0_2] : memref<39x384xbf16, #tpu.memory_space<vmem>>, vector<39x384xbf16>
    %cst = arith.constant dense<0.000000e+00> : vector<16x384xf32>
    %2 = tpu.matmul %0, %1, %cst {dimension_numbers = #tpu.dot_dimension_numbers<[1], [0], [0], [1], [0, 0, 1, 1], [], []>} : vector<16x39xbf16>, vector<39x384xbf16>, vector<16x384xf32> -> vector<16x384xf32>
    %c0_3 = arith.constant 0 : index
    %c0_4 = arith.constant 0 : index
    %3 = vector.load %arg3[%c0_3, %c0_4] : memref<1x384xf32, #tpu.memory_space<vmem>>, vector<1x384xf32>
    %4 = vector.broadcast %3 : vector<1x384xf32> to vector<16x384xf32>
    %5 = arith.addf %2, %4 : vector<16x384xf32>
    %cst_5 = arith.constant 0.000000e+00 : f32
    %6 = vector.broadcast %cst_5 : f32 to vector<16x384xf32>
    %7 = arith.maximumf %5, %6 : vector<16x384xf32>
    %8 = vector.extract_strided_slice %7 {offsets = [0, 0], sizes = [16, 128], strides = [1, 1]} : vector<16x384xf32> to vector<16x128xf32>
    %9 = vector.extract_strided_slice %7 {offsets = [0, 128], sizes = [16, 128], strides = [1, 1]} : vector<16x384xf32> to vector<16x128xf32>
    %10 = vector.extract_strided_slice %7 {offsets = [0, 256], sizes = [16, 128], strides = [1, 1]} : vector<16x384xf32> to vector<16x128xf32>
    %11 = tpu.concatenate %8, %9, %10 in 0 : vector<16x128xf32>, vector<16x128xf32>, vector<16x128xf32> -> vector<48x128xf32>
    %12 = arith.truncf %11 : vector<48x128xf32> to vector<48x128xbf16>
    %c0_6 = arith.constant 0 : index
    %c0_7 = arith.constant 0 : index
    %13 = vector.load %arg4[%c0_6, %c0_7] : memref<128x128xbf16, #tpu.memory_space<vmem>>, vector<128x128xbf16>
    %cst_8 = arith.constant dense<0.000000e+00> : vector<48x128xf32>
    %14 = tpu.matmul %12, %13, %cst_8 {dimension_numbers = #tpu.dot_dimension_numbers<[1], [0], [0], [1], [0, 0, 1, 1], [], []>} : vector<48x128xbf16>, vector<128x128xbf16>, vector<48x128xf32> -> vector<48x128xf32>
    %c0_9 = arith.constant 0 : index
    %c0_10 = arith.constant 0 : index
    %15 = vector.load %arg5[%c0_9, %c0_10] : memref<1x128xf32, #tpu.memory_space<vmem>>, vector<1x128xf32>
    %16 = vector.broadcast %15 : vector<1x128xf32> to vector<48x128xf32>
    %17 = arith.addf %14, %16 : vector<48x128xf32>
    %cst_11 = arith.constant 0.000000e+00 : f32
    %18 = vector.broadcast %cst_11 : f32 to vector<48x128xf32>
    %19 = arith.maximumf %17, %18 : vector<48x128xf32>
    %c0_12 = arith.constant 0 : index
    %c0_13 = arith.constant 0 : index
    %20 = vector.load %arg6[%c0_12, %c0_13] : memref<1x128xf32, #tpu.memory_space<vmem>>, vector<1x128xf32>
    %21 = vector.broadcast %20 : vector<1x128xf32> to vector<48x128xf32>
    %22 = arith.mulf %19, %21 : vector<48x128xf32>
    %cst_14 = arith.constant dense<0.000000e+00> : vector<48xf32>
    %23 = vector.multi_reduction <add>, %22, %cst_14 [1] : vector<48x128xf32> to vector<48xf32>
    %24 = vector.shape_cast %23 : vector<48xf32> to vector<48x1xf32>
    %c0_15 = arith.constant 0 : index
    %c0_16 = arith.constant 0 : index
    %25 = vector.load %arg7[%c0_15, %c0_16] : memref<1x1xf32, #tpu.memory_space<vmem>>, vector<1x1xf32>
    %26 = vector.broadcast %25 : vector<1x1xf32> to vector<48x1xf32>
    %27 = arith.addf %24, %26 : vector<48x1xf32>
    %28 = vector.extract_strided_slice %27 {offsets = [0, 0], sizes = [16, 1], strides = [1, 1]} : vector<48x1xf32> to vector<16x1xf32>
    %c0_17 = arith.constant 0 : index
    %c0_18 = arith.constant 0 : index
    %29 = vector.load %arg8[%c0_17, %c0_18] : memref<16x3xf32, #tpu.memory_space<vmem>>, vector<16x1xf32>
    tpu.vector_store %arg8[%c0_17, %c0_18], %28 {strides = array<i32>} : memref<16x3xf32, #tpu.memory_space<vmem>>, vector<16x1xf32>,
    %30 = vector.extract_strided_slice %27 {offsets = [16, 0], sizes = [16, 1], strides = [1, 1]} : vector<48x1xf32> to vector<16x1xf32>
    %c0_19 = arith.constant 0 : index
    %c1 = arith.constant 1 : index
    %31 = vector.load %arg8[%c0_19, %c1] : memref<16x3xf32, #tpu.memory_space<vmem>>, vector<16x1xf32>
    tpu.vector_store %arg8[%c0_19, %c1], %30 {strides = array<i32>} : memref<16x3xf32, #tpu.memory_space<vmem>>, vector<16x1xf32>,
    %32 = vector.extract_strided_slice %27 {offsets = [32, 0], sizes = [16, 1], strides = [1, 1]} : vector<48x1xf32> to vector<16x1xf32>
    %c0_20 = arith.constant 0 : index
    %c2 = arith.constant 2 : index
    %33 = vector.load %arg8[%c0_20, %c2] : memref<16x3xf32, #tpu.memory_space<vmem>>, vector<16x1xf32>
    tpu.vector_store %arg8[%c0_20, %c2], %32 {strides = array<i32>} : memref<16x3xf32, #tpu.memory_space<vmem>>, vector<16x1xf32>,
    return
  }
  func.func @transform_0(%arg0: i32) -> (i32, i32) {
    %c0_i32 = arith.constant 0 : i32
    %c0_i32_0 = arith.constant 0 : i32
    return %arg0, %c0_i32 : i32, i32
  }
  func.func @transform_1(%arg0: i32) -> (i32, i32) {
    %c0_i32 = arith.constant 0 : i32
    %c0_i32_0 = arith.constant 0 : i32
    %c0_i32_1 = arith.constant 0 : i32
    return %c0_i32, %c0_i32_0 : i32, i32
  }
  func.func @transform_2(%arg0: i32) -> (i32, i32) {
    %c0_i32 = arith.constant 0 : i32
    %c0_i32_0 = arith.constant 0 : i32
    %c0_i32_1 = arith.constant 0 : i32
    return %c0_i32, %c0_i32_0 : i32, i32
  }
  func.func @transform_3(%arg0: i32) -> (i32, i32) {
    %c0_i32 = arith.constant 0 : i32
    %c0_i32_0 = arith.constant 0 : i32
    %c0_i32_1 = arith.constant 0 : i32
    return %c0_i32, %c0_i32_0 : i32, i32
  }
  func.func @transform_4(%arg0: i32) -> (i32, i32) {
    %c0_i32 = arith.constant 0 : i32
    %c0_i32_0 = arith.constant 0 : i32
    %c0_i32_1 = arith.constant 0 : i32
    return %c0_i32, %c0_i32_0 : i32, i32
  }
  func.func @transform_5(%arg0: i32) -> (i32, i32) {
    %c0_i32 = arith.constant 0 : i32
    %c0_i32_0 = arith.constant 0 : i32
    %c0_i32_1 = arith.constant 0 : i32
    return %c0_i32, %c0_i32_0 : i32, i32
  }
  func.func @transform_6(%arg0: i32) -> (i32, i32) {
    %c0_i32 = arith.constant 0 : i32
    %c0_i32_0 = arith.constant 0 : i32
    %c0_i32_1 = arith.constant 0 : i32
    return %c0_i32, %c0_i32_0 : i32, i32
  }
  func.func @transform_7(%arg0: i32) -> (i32, i32) {
    %c0_i32 = arith.constant 0 : i32
    %c0_i32_0 = arith.constant 0 : i32
    return %arg0, %c0_i32 : i32, i32
  }
}

</mosaic_0001>

<llo_original>
// kernel: tpu_custom_call.1
$region0: #{tpu_custom_call.1}
  #allocation0 [shape = 'u32[]', space=smem, size = 0x4, offset = 0x4, fixed_abs, tag = 'smem constant byte address 0x4 - core index']
  #allocation1 [shape = 'u32[144,128]{1,0:T(1,128)}', space=vmem, size = 0x12000, scoped, tag = 'internal scratch']
  #allocation2 [shape = 'f32[1,1]{1,0:T(1,128)S(1)}', space=vmem, size = 0x200, scoped, tag = 'scoped memory for tpu_custom_call.1']
  %s0 = inlined_call_operand.hbm [shape: bf16[16,39], index: 0, kind: input, shape index: {}]
  %s1 = inlined_call_operand.hbm [shape: bf16[39,384], index: 1, kind: input, shape index: {}]
  %s2 = inlined_call_operand.vmem [shape: f32[1,384], index: 2, kind: input, shape index: {}]
  %s3 = inlined_call_operand.hbm [shape: bf16[128,128], index: 3, kind: input, shape index: {}]
  %s4 = inlined_call_operand.vmem [shape: f32[1,128], index: 4, kind: input, shape index: {}]
  %s5 = inlined_call_operand.vmem [shape: f32[1,128], index: 5, kind: input, shape index: {}]
  %s6 = inlined_call_operand.<no memory space> [shape: f32[1,1], index: 6, kind: input, shape index: {}]
  %s7 = inlined_call_operand.vmem [shape: f32[16,3], index: 7, kind: output, shape index: {}]
  %s8 = sld [smem:[#allocation0]]
  $region50: #{tpu_custom_call.1} parent=0
    _
  %s10 = ssub.s32 1, %s8
  %s11 = scalar_select 0, %s10, %s8
  %v12 = vstv %s6
  %13 = vst [vmem:[#allocation2] sm:$0x1] %v12
  $region1: #{tpu_custom_call.1} parent=0
    #allocation3 [shape = 'u8[4096]{0}', space=vmem, size = 0x1000, scoped, tag = 'input window, operand 0, single buffered']
    #allocation4 [shape = 's32[1]{0}', space=sflag, size = 0x4, scoped, tag = 'scoped memory for tpu_custom_call.1']
    #allocation5 [shape = 'u8[30720]{0}', space=vmem, size = 0x7800, scoped, tag = 'input window, operand 1, single buffered']
    #allocation6 [shape = 's32[1]{0}', space=sflag, size = 0x4, scoped, tag = 'scoped memory for tpu_custom_call.1']
    #allocation7 [shape = 'u8[32768]{0}', space=vmem, size = 0x8000, scoped, tag = 'input window, operand 3, single buffered']
    %14 = vsyncpa [#allocation4], 0
    %15 = vsyncpa [#allocation6], 0
    // Predicated region
    $region2: #{tpu_custom_call.1} parent=1 // pred_check
      _
    $region3: #{tpu_custom_call.1} parent=1 // pred_check_branch
      %17 = sbr.rel (0) target = $region5
    $region4: #{tpu_custom_call.1} parent=1 // pred_region
      %s19 = ssub.s32 128, 128
      %20 = vsyncadd [#allocation4], %s19
      %s21 = sshll.u32 [#allocation3], 4
      %s22 = int_to_ptr.vmem [resolvable:$true] %s21
      %27 = dma.hbm_to_vmem [thread:$0]  %s0, 128, %s22, [#allocation4], 64, 64, 4
    $region5: #{tpu_custom_call.1} parent=1 // pred_fallthru
      _
    // Predicated region
    $region6: #{tpu_custom_call.1} parent=1 // pred_check
      _
    $region7: #{tpu_custom_call.1} parent=1 // pred_check_branch
      %29 = sbr.rel (0) target = $region9
    $region8: #{tpu_custom_call.1} parent=1 // pred_region
      %s31 = ssub.s32 960, 960
      %32 = vsyncadd [#allocation6], %s31
      %s33 = sshll.u32 [#allocation5], 4
      %s34 = int_to_ptr.vmem [resolvable:$true] %s33
      %39 = dma.hbm_to_vmem [thread:$0]  %s1, 960, %s34, [#allocation6], 192, 192, 12
    $region9: #{tpu_custom_call.1} parent=1 // pred_fallthru
      _
    // Predicated region
    $region10: #{tpu_custom_call.1} parent=1 // pred_check
      _
    $region11: #{tpu_custom_call.1} parent=1 // pred_check_branch
      %41 = sbr.rel (0) target = $region13
    $region12: #{tpu_custom_call.1} parent=1 // pred_region
      _
    $region13: #{tpu_custom_call.1} parent=1 // pred_fallthru
      _
    // Predicated region
    $region14: #{tpu_custom_call.1} parent=1 // pred_check
      _
    $region15: #{tpu_custom_call.1} parent=1 // pred_check_branch
      %43 = sbr.rel (0) target = $region17
    $region16: #{tpu_custom_call.1} parent=1 // pred_region
      %s45 = ssub.s32 1024, 1024
      %46 = vsyncadd [#allocation6], %s45
      %s47 = sshll.u32 [#allocation7], 4
      %s48 = int_to_ptr.vmem [resolvable:$true] %s47
      %53 = dma.hbm_to_vmem [thread:$0]  %s3, 1024, %s48, [#allocation6], 64, 64, 4
    $region17: #{tpu_custom_call.1} parent=1 // pred_fallthru
      _
    // Predicated region
    $region18: #{tpu_custom_call.1} parent=1 // pred_check
      _
    $region19: #{tpu_custom_call.1} parent=1 // pred_check_branch
      %55 = sbr.rel (0) target = $region21
    $region20: #{tpu_custom_call.1} parent=1 // pred_region
      _
    $region21: #{tpu_custom_call.1} parent=1 // pred_fallthru
      _
    // Predicated region
    $region22: #{tpu_custom_call.1} parent=1 // pred_check
      _
    $region23: #{tpu_custom_call.1} parent=1 // pred_check_branch
      %57 = sbr.rel (0) target = $region25
    $region24: #{tpu_custom_call.1} parent=1 // pred_region
      _
    $region25: #{tpu_custom_call.1} parent=1 // pred_fallthru
      _
    // Predicated region
    $region26: #{tpu_custom_call.1} parent=1 // pred_check
      _
    $region27: #{tpu_custom_call.1} parent=1 // pred_check_branch
      %59 = sbr.rel (0) target = $region29
    $region28: #{tpu_custom_call.1} parent=1 // pred_region
      _
    $region29: #{tpu_custom_call.1} parent=1 // pred_fallthru
      _
    // Predicated region
    $region30: #{tpu_custom_call.1} parent=1 // pred_check
      _
    $region31: #{tpu_custom_call.1} parent=1 // pred_check_branch
      %61 = sbr.rel (0) target = $region33
    $region32: #{tpu_custom_call.1} parent=1 // pred_region
      %62 = dma.done [#allocation4], 128
    $region33: #{tpu_custom_call.1} parent=1 // pred_fallthru
      _
    // Predicated region
    $region34: #{tpu_custom_call.1} parent=1 // pred_check
      _
    $region35: #{tpu_custom_call.1} parent=1 // pred_check_branch
      %64 = sbr.rel (0) target = $region37
    $region36: #{tpu_custom_call.1} parent=1 // pred_region
      %65 = dma.done [#allocation6], 960
    $region37: #{tpu_custom_call.1} parent=1 // pred_fallthru
      _
    // Predicated region
    $region38: #{tpu_custom_call.1} parent=1 // pred_check
      _
    $region39: #{tpu_custom_call.1} parent=1 // pred_check_branch
      %67 = sbr.rel (0) target = $region41
    $region40: #{tpu_custom_call.1} parent=1 // pred_region
      %68 = dma.done [#allocation6], 1024
    $region41: #{tpu_custom_call.1} parent=1 // pred_fallthru
      _
    %v70 = vld [vmem:[#allocation3] sm:$0xf]
    %v71 = vld [vmem:[#allocation3 + $0x4] sm:$0xf]
    %v72 = vld [vmem:[#allocation5] sm:$0xff]
    %v73 = vld [vmem:[#allocation5 + $0x8] sm:$0xf]
    %v74 = vld [vmem:[#allocation5 + $0xc] sm:$0xff]
    %v75 = vld [vmem:[#allocation5 + $0x14] sm:$0xf]
    %v76 = vld [vmem:[#allocation5 + $0x18] sm:$0xff]
    %v77 = vld [vmem:[#allocation5 + $0x20] sm:$0xf]
    %v78 = vld [vmem:[#allocation5 + $0x24] sm:$0xff]
    %v79 = vld [vmem:[#allocation5 + $0x2c] sm:$0xf]
    %v80 = vld [vmem:[#allocation5 + $0x30] sm:$0xff]
    %v81 = vld [vmem:[#allocation5 + $0x38] sm:$0xf]
    %v82 = vld [vmem:[%s2] sm:$0x7]
    %v84 = vlaneseq
    %v85 = vshrl.u32 %v84, 7
    %v86 = vsub.s32 0, %v85
    %v87 = vrot.slane %v82, %v86
    %v88 = vlaneseq
    %v89 = vshrl.u32 %v88, 7
    %v90 = vsub.s32 1, %v89
    %v91 = vrot.slane %v82, %v90
    %v92 = vlaneseq
    %v93 = vshrl.u32 %v92, 7
    %v94 = vsub.s32 2, %v93
    %v95 = vrot.slane %v82, %v94
    %v101 = vunpack.c.l.b16 %v70
    %v102 = vunpack.c.l.b16 %v71
    %v103 = vpack.c.b16 %v102, %v101
    %v114 = vunpack.c.l.b16 %v72
    %v115 = vunpack.c.h.b16 %v72
    %v116 = vunpack.c.l.b16 %v73
    %v117 = vunpack.c.l.b16 %v74
    %v118 = vunpack.c.h.b16 %v74
    %v119 = vunpack.c.l.b16 %v75
    %v120 = vunpack.c.l.b16 %v76
    %v121 = vunpack.c.h.b16 %v76
    %v122 = vunpack.c.l.b16 %v77
    %v123 = vunpack.c.l.b16 %v78
    %v124 = vunpack.c.h.b16 %v78
    %v125 = vunpack.c.l.b16 %v79
    %v126 = vunpack.c.l.b16 %v80
    %v127 = vunpack.c.h.b16 %v80
    %v128 = vunpack.c.l.b16 %v81
    %v129 = vpack.c.b16 %v117, %v114
    %v130 = vpack.c.b16 %v118, %v115
    %v131 = vpack.c.b16 %v119, %v116
    %v132 = vpack.c.b16 %v123, %v120
    %v133 = vpack.c.b16 %v124, %v121
    %v134 = vpack.c.b16 %v125, %v122
    %v135 = vpack.c.b16 %v126, %v126
    %v136 = vpack.c.b16 %v127, %v127
    %v137 = vpack.c.b16 %v128, %v128
    %vm144 = vcmask 318464
    %v146 = vsel %vm144, %v103, 0
    %vm148 = vcmask 1042432
    %vm149 = vcmask 1043456
    %v150 = vsel %vm148, 4294967295, 65535
    %v151 = vsel %vm149, %v150, 0
    %v153 = vand.u32 %v135, %v151
    %v156 = vand.u32 %v136, %v151
    %v159 = vand.u32 %v137, %v151
    %161 = vmatprep.subr.bf16.mxu0 %v130
    %162 = vmatpush1.bf16.msra.mxu0 %v129
    %163 = vmatprep.subr.bf16.mxu0 %v133
    %164 = vmatpush1.bf16.msra.mxu0 %v132
    %165 = vmatprep.subr.bf16.mxu0 %v156
    %166 = vmatpush1.bf16.msra.mxu0 %v153
    %167 = vmatprep.subr.bf16.mxu0 0
    %168 = vmatpush1.bf16.msra.mxu0 0
    %169 = vmatprep.subr.bf16.mxu0 0
    %170 = vmatpush1.bf16.msra.mxu0 0
    %171 = vmatprep.subr.bf16.mxu0 0
    %172 = vmatpush1.bf16.msra.mxu0 0
    %173 = vmatprep.subr.bf16.mxu0 0
    %174 = vmatpush1.bf16.msra.mxu0 0
    %175 = vmatprep.subr.bf16.mxu0 0
    %176 = vmatpush1.bf16.msra.mxu0 0
    %177 = vmatprep.subr.bf16.mxu0 0
    %178 = vmatpush1.bf16.msra.mxu0 0
    %179 = vmatprep.subr.bf16.mxu0 0
    %180 = vmatpush1.bf16.msra.mxu0 0
    %181 = vmatprep.subr.bf16.mxu0 0
    %182 = vmatpush1.bf16.msra.mxu0 0
    %183 = vmatprep.subr.bf16.mxu0 0
    %184 = vmatpush1.bf16.msra.mxu0 0
    %185 = vmatprep.subr.bf16.mxu0 0
    %186 = vmatpush1.bf16.msra.mxu0 0
    %187 = vmatprep.subr.bf16.mxu0 0
    %188 = vmatpush1.bf16.msra.mxu0 0
    %189 = vmatprep.subr.bf16.mxu0 0
    %190 = vmatpush1.bf16.msra.mxu0 0
    %191 = vmatprep.subr.bf16.mxu0 0
    %192 = vmatpush1.bf16.msra.mxu0 0
    %193 = vmatprep.mubr.bf16.mxu0 0
    %194 = vmatmul.mubr.bf16.gmra.mrb[0].mxu0 %v146
    %v195 = vpop.f32.mrb[0].mxu0
    %v196 = vadd.f32 %v87, %v195
    %v197 = vpop.f32.mrb[0].mxu0
    %v198 = vadd.f32 %v91, %v197
    %v199 = vpop.f32.mrb[0].mxu0
    %v200 = vadd.f32 %v87, %v199
    %v201 = vpop.f32.mrb[0].mxu0
    %v202 = vadd.f32 %v91, %v201
    %203 = vdwg.mxu0
    %204 = vmatprep.subr.bf16.mxu0 0
    %205 = vmatpush1.bf16.msra.mxu0 %v131
    %206 = vmatprep.subr.bf16.mxu0 0
    %207 = vmatpush1.bf16.msra.mxu0 %v134
    %208 = vmatprep.subr.bf16.mxu0 0
    %209 = vmatpush1.bf16.msra.mxu0 %v159
    %210 = vmatprep.subr.bf16.mxu0 0
    %211 = vmatpush1.bf16.msra.mxu0 0
    %212 = vmatprep.subr.bf16.mxu0 0
    %213 = vmatpush1.bf16.msra.mxu0 0
    %214 = vmatprep.subr.bf16.mxu0 0
    %215 = vmatpush1.bf16.msra.mxu0 0
    %216 = vmatprep.subr.bf16.mxu0 0
    %217 = vmatpush1.bf16.msra.mxu0 0
    %218 = vmatprep.subr.bf16.mxu0 0
    %219 = vmatpush1.bf16.msra.mxu0 0
    %220 = vmatprep.subr.bf16.mxu0 0
    %221 = vmatpush1.bf16.msra.mxu0 0
    %222 = vmatprep.subr.bf16.mxu0 0
    %223 = vmatpush1.bf16.msra.mxu0 0
    %224 = vmatprep.subr.bf16.mxu0 0
    %225 = vmatpush1.bf16.msra.mxu0 0
    %226 = vmatprep.subr.bf16.mxu0 0
    %227 = vmatpush1.bf16.msra.mxu0 0
    %228 = vmatprep.subr.bf16.mxu0 0
    %229 = vmatpush1.bf16.msra.mxu0 0
    %230 = vmatprep.subr.bf16.mxu0 0
    %231 = vmatpush1.bf16.msra.mxu0 0
    %232 = vmatprep.subr.bf16.mxu0 0
    %233 = vmatpush1.bf16.msra.mxu0 0
    %234 = vmatprep.subr.bf16.mxu0 0
    %235 = vmatpush1.bf16.msra.mxu0 0
    %236 = vmatprep.mubr.bf16.mxu0 0
    %237 = vmatmul.mubr.bf16.gmra.mrb[0].mxu0 %v146
    %v238 = vpop.f32.mrb[0].mxu0
    %v239 = vadd.f32 %v95, %v238
    %v240 = vpop.f32.mrb[0].mxu0
    %v241 = vpop.f32.mrb[0].mxu0
    %v242 = vadd.f32 %v95, %v241
    %v243 = vpop.f32.mrb[0].mxu0
    %244 = vdwg.mxu0
    %v245 = vmax.f32 %v196, 0.0
    %v246 = vmax.f32 %v198, 0.0
    %v247 = vmax.f32 %v239, 0.0
    %v248 = vmax.f32 %v200, 0.0
    %v249 = vmax.f32 %v202, 0.0
    %v250 = vmax.f32 %v242, 0.0
    %v251 = vpack.c.bf16 %v248, %v245
    %v252 = vpack.c.bf16 %v249, %v246
    %v253 = vpack.c.bf16 %v250, %v247
    %v254 = vld [vmem:[#allocation7] sm:$0xf]
    %v255 = vld [vmem:[#allocation7 + $0x4] sm:$0xf]
    %v256 = vld [vmem:[#allocation7 + $0x8] sm:$0xf]
    %v257 = vld [vmem:[#allocation7 + $0xc] sm:$0xf]
    %v258 = vld [vmem:[#allocation7 + $0x10] sm:$0xf]
    %v259 = vld [vmem:[#allocation7 + $0x14] sm:$0xf]
    %v260 = vld [vmem:[#allocation7 + $0x18] sm:$0xf]
    %v261 = vld [vmem:[#allocation7 + $0x1c] sm:$0xf]
    %v262 = vld [vmem:[#allocation7 + $0x20] sm:$0xf]
    %v263 = vld [vmem:[#allocation7 + $0x24] sm:$0xf]
    %v264 = vld [vmem:[#allocation7 + $0x28] sm:$0xf]
    %v265 = vld [vmem:[#allocation7 + $0x2c] sm:$0xf]
    %v266 = vld [vmem:[#allocation7 + $0x30] sm:$0xf]
    %v267 = vld [vmem:[#allocation7 + $0x34] sm:$0xf]
    %v268 = vld [vmem:[#allocation7 + $0x38] sm:$0xf]
    %v269 = vld [vmem:[#allocation7 + $0x3c] sm:$0xf]
    %v270 = vld [vmem:[%s4] sm:$0x1]
    %v272 = vlaneseq
    %v273 = vshrl.u32 %v272, 7
    %v274 = vsub.s32 0, %v273
    %v275 = vrot.slane %v270, %v274
    %v293 = vunpack.c.l.b16 %v254
    %v294 = vunpack.c.l.b16 %v255
    %v295 = vunpack.c.l.b16 %v256
    %v296 = vunpack.c.l.b16 %v257
    %v297 = vunpack.c.l.b16 %v258
    %v298 = vunpack.c.l.b16 %v259
    %v299 = vunpack.c.l.b16 %v260
    %v300 = vunpack.c.l.b16 %v261
    %v301 = vunpack.c.l.b16 %v262
    %v302 = vunpack.c.l.b16 %v263
    %v303 = vunpack.c.l.b16 %v264
    %v304 = vunpack.c.l.b16 %v265
    %v305 = vunpack.c.l.b16 %v266
    %v306 = vunpack.c.l.b16 %v267
    %v307 = vunpack.c.l.b16 %v268
    %v308 = vunpack.c.l.b16 %v269
    %v309 = vpack.c.b16 %v294, %v293
    %v310 = vpack.c.b16 %v296, %v295
    %v311 = vpack.c.b16 %v298, %v297
    %v312 = vpack.c.b16 %v300, %v299
    %v313 = vpack.c.b16 %v302, %v301
    %v314 = vpack.c.b16 %v304, %v303
    %v315 = vpack.c.b16 %v306, %v305
    %v316 = vpack.c.b16 %v308, %v307
    %325 = vmatprep.subr.bf16.mxu0 0
    %326 = vmatpush1.bf16.msra.mxu0 %v309
    %327 = vmatprep.subr.bf16.mxu0 0
    %328 = vmatpush1.bf16.msra.mxu0 %v310
    %329 = vmatprep.subr.bf16.mxu0 0
    %330 = vmatpush1.bf16.msra.mxu0 %v311
    %331 = vmatprep.subr.bf16.mxu0 0
    %332 = vmatpush1.bf16.msra.mxu0 %v312
    %333 = vmatprep.subr.bf16.mxu0 0
    %334 = vmatpush1.bf16.msra.mxu0 %v313
    %335 = vmatprep.subr.bf16.mxu0 0
    %336 = vmatpush1.bf16.msra.mxu0 %v314
    %337 = vmatprep.subr.bf16.mxu0 0
    %338 = vmatpush1.bf16.msra.mxu0 %v315
    %339 = vmatprep.subr.bf16.mxu0 0
    %340 = vmatpush1.bf16.msra.mxu0 %v316
    %341 = vmatprep.subr.bf16.mxu0 0
    %342 = vmatpush1.bf16.msra.mxu0 0
    %343 = vmatprep.subr.bf16.mxu0 0
    %344 = vmatpush1.bf16.msra.mxu0 0
    %345 = vmatprep.subr.bf16.mxu0 0
    %346 = vmatpush1.bf16.msra.mxu0 0
    %347 = vmatprep.subr.bf16.mxu0 0
    %348 = vmatpush1.bf16.msra.mxu0 0
    %349 = vmatprep.subr.bf16.mxu0 0
    %350 = vmatpush1.bf16.msra.mxu0 0
    %351 = vmatprep.subr.bf16.mxu0 0
    %352 = vmatpush1.bf16.msra.mxu0 0
    %353 = vmatprep.subr.bf16.mxu0 0
    %354 = vmatpush1.bf16.msra.mxu0 0
    %355 = vmatprep.subr.bf16.mxu0 0
    %356 = vmatpush1.bf16.msra.mxu0 0
    %357 = vmatprep.mubr.bf16.mxu0 0
    %358 = vmatmul.mubr.bf16.gmra.mrb[0].mxu0 %v251
    %v359 = vpop.f32.mrb[0].mxu0
    %v360 = vadd.f32 %v275, %v359
    %v361 = vpop.f32.mrb[0].mxu0
    %v362 = vpop.f32.mrb[0].mxu0
    %v363 = vadd.f32 %v275, %v362
    %v364 = vpop.f32.mrb[0].mxu0
    %365 = vmatprep.mubr.bf16.mxu0 0
    %366 = vmatmul.mubr.bf16.gmra.mrb[0].mxu0 %v252
    %v367 = vpop.f32.mrb[0].mxu0
    %v368 = vadd.f32 %v275, %v367
    %v369 = vpop.f32.mrb[0].mxu0
    %v370 = vpop.f32.mrb[0].mxu0
    %v371 = vadd.f32 %v275, %v370
    %v372 = vpop.f32.mrb[0].mxu0
    %373 = vmatprep.mubr.bf16.mxu0 0
    %374 = vmatmul.mubr.bf16.gmra.mrb[0].mxu0 %v253
    %v375 = vpop.f32.mrb[0].mxu0
    %v376 = vadd.f32 %v275, %v375
    %v377 = vpop.f32.mrb[0].mxu0
    %v378 = vpop.f32.mrb[0].mxu0
    %v379 = vadd.f32 %v275, %v378
    %v380 = vpop.f32.mrb[0].mxu0
    %381 = vdwg.mxu0
    %v382 = vmax.f32 %v360, 0.0
    %v383 = vmax.f32 %v363, 0.0
    %v384 = vmax.f32 %v368, 0.0
    %v385 = vmax.f32 %v371, 0.0
    %v386 = vmax.f32 %v376, 0.0
    %v387 = vmax.f32 %v379, 0.0
    %v388 = vld [vmem:[%s5] sm:$0x1]
    %v390 = vlaneseq
    %v391 = vshrl.u32 %v390, 7
    %v392 = vsub.s32 0, %v391
    %v393 = vrot.slane %v388, %v392
    %v395 = vmul.f32 %v382, %v393
    %v396 = vmul.f32 %v383, %v393
    %v397 = vmul.f32 %v384, %v393
    %v398 = vmul.f32 %v385, %v393
    %v399 = vmul.f32 %v386, %v393
    %v400 = vmul.f32 %v387, %v393
    %401 = vadd.xlane.f32.xlu0 %v395
    %v402 = vpop.xlane.xlu0 %401
    %403 = vadd.xlane.f32.xlu0 %v396
    %v404 = vpop.xlane.xlu0 %403
    %405 = vadd.xlane.f32.xlu0 %v397
    %v406 = vpop.xlane.xlu0 %405
    %407 = vadd.xlane.f32.xlu0 %v398
    %v408 = vpop.xlane.xlu0 %407
    %409 = vadd.xlane.f32.xlu0 %v399
    %v410 = vpop.xlane.xlu0 %409
    %411 = vadd.xlane.f32.xlu0 %v400
    %v412 = vpop.xlane.xlu0 %411
    %v413 = vld [vmem:[#allocation2] sm:$0x1]
    %v415 = vlaneseq
    %v416 = vshrl.u32 %v415, 7
    %v417 = vsub.s32 0, %v416
    %v418 = vrot.slane %v413, %v417
    %v420 = vadd.f32 %v402, %v418
    %v421 = vadd.f32 %v404, %v418
    %v422 = vadd.f32 %v406, %v418
    %v423 = vadd.f32 %v408, %v418
    %v424 = vadd.f32 %v410, %v418
    %v425 = vadd.f32 %v412, %v418
    %vm426 = vcmask 7168
    %427 = vst.msk [vmem:[%s7] sm:$0xff] %vm426, %v420
    %428 = vst.msk [vmem:[%s7 + $0x8] sm:$0xff] %vm426, %v421
    %431 = vrot.lane.b32.xlu0 %v422, 1
    %v432 = vpop.permute.xlu0 %431
    %433 = vrot.lane.b32.xlu0 %v423, 1
    %v434 = vpop.permute.xlu0 %433
    %vm437 = vcmask 15368
    %438 = vst.msk [vmem:[%s7] sm:$0xff] %vm437, %v432
    %439 = vst.msk [vmem:[%s7 + $0x8] sm:$0xff] %vm437, %v434
    %442 = vrot.lane.b32.xlu0 %v424, 2
    %v443 = vpop.permute.xlu0 %442
    %444 = vrot.lane.b32.xlu0 %v425, 2
    %v445 = vpop.permute.xlu0 %444
    %vm448 = vcmask 23568
    %449 = vst.msk [vmem:[%s7] sm:$0xff] %vm448, %v443
    %450 = vst.msk [vmem:[%s7 + $0x8] sm:$0xff] %vm448, %v445
    // Predicated region
    $region42: #{tpu_custom_call.1} parent=1 // pred_check
      _
    $region43: #{tpu_custom_call.1} parent=1 // pred_check_branch
      %452 = sbr.rel (0) target = $region45
    $region44: #{tpu_custom_call.1} parent=1 // pred_region
      _
    $region45: #{tpu_custom_call.1} parent=1 // pred_fallthru
      _
    // Predicated region
    $region46: #{tpu_custom_call.1} parent=1 // pred_check
      _
    $region47: #{tpu_custom_call.1} parent=1 // pred_check_branch
      %454 = sbr.rel (0) target = $region49
    $region48: #{tpu_custom_call.1} parent=1 // pred_region
      _
    $region49: #{tpu_custom_call.1} parent=1 // pred_fallthru
      _
    %455 = vsyncpa [#allocation4], 1
    %456 = vsyncpa [#allocation6], 1

</llo_original>
